<compile_context>
chip_gen: v6e
topology: v6e:2x2x1
jax: 0.10.0
libtpu: 0.0.40
codegen_flags: <defaults>
</compile_context>

<pallas_src>
import jax
import jax.numpy as jnp
from jax.experimental import pallas as pl
from jax.experimental.pallas import tpu as pltpu


# ----------------------------- config ---------------------------------------

CONTROLLER_CONF = {
    "arm": {"actions": 3, "hidden": 16},
    "leg": {"actions": 4, "hidden": 16},
}
CONTROLLER_LIST = ["arm", "arm", "leg", "leg"]
CTRL_NAMES = sorted(CONTROLLER_CONF.keys())  # deterministic ordering of shared heads

N_STATES = 24
N_HIDDEN = 32
BATCH = 4

TOTAL_ACTIONS = sum(CONTROLLER_CONF[n]["actions"] for n in CONTROLLER_LIST)   # 14
SUM_CTRL_HIDDEN = sum(CONTROLLER_CONF[n]["hidden"] for n in CONTROLLER_LIST)  # 64

LANE = 128        # feature dims padded to one full lane width -> unmasked vector ops
MAX_B_TILE = 512  # per review: >= 256; amortizes per-step overhead and fills MXU M dim


# ----------------------------- parameters -----------------------------------

def xavier_uniform(key, fan_in, fan_out):
    limit = (6.0 / (fan_in + fan_out)) ** 0.5
    return jax.random.uniform(key, (fan_in, fan_out), jnp.float32, -limit, limit)


def linear_params(key, fan_in, fan_out):
    kw, kb = jax.random.split(key)
    w = xavier_uniform(kw, fan_in, fan_out)
    bound = 1.0 / (fan_in ** 0.5)  # PyTorch default bias init
    b = jax.random.uniform(kb, (1, fan_out), jnp.float32, -bound, bound)
    return w, b


def make_params(key):
    keys = jax.random.split(key, 1 + len(CONTROLLER_LIST) + len(CTRL_NAMES))
    ki = iter(keys)
    params = {}
    params["lin1"] = linear_params(next(ki), N_STATES, N_HIDDEN)
    params["inputs"] = []
    for name in CONTROLLER_LIST:
        c_hidden = CONTROLLER_CONF[name]["hidden"]
        params["inputs"].append(linear_params(next(ki), N_HIDDEN, c_hidden))
    params["ctrl"] = {}
    for name in CTRL_NAMES:
        conf = CONTROLLER_CONF[name]
        params["ctrl"][name] = linear_params(next(ki), conf["hidden"], conf["actions"])
    return params


# --------------------- host-side one-time weight packing --------------------

def _pad2(m, rows, cols):
    """Zero-pad a 2-D array up to (rows, cols)."""
    return jnp.zeros((rows, cols), jnp.float32).at[: m.shape[0], : m.shape[1]].set(m)


def prepare_packed_params(params):
    """Fuse + pad all weights once (host side).

    Returns:
      w1_p    : (N_STATES, 128) bf16  -- lin1 weight, lanes padded with zeros
      w23_p   : (128, 128)      bf16  -- fused (controller-input @ shared-head) weight
      b_stack : (2, 128)        f32   -- [b1 ; b23] biases, lane-padded with zeros
    """
    w1, b1 = params["lin1"]

    # Fuse the per-instance input projections along the output axis.
    w_in_all = jnp.concatenate([w for w, _ in params["inputs"]], axis=1)   # (32, 64)
    b_in_all = jnp.concatenate([b for _, b in params["inputs"]], axis=1)   # (1, 64)

    # Block-diagonal shared heads, laid out in CONTROLLER_LIST order.
    wc_all = jnp.zeros((SUM_CTRL_HIDDEN, TOTAL_ACTIONS), jnp.float32)
    bc_parts = []
    row = col = 0
    for name in CONTROLLER_LIST:
        h = CONTROLLER_CONF[name]["hidden"]
        a = CONTROLLER_CONF[name]["actions"]
        wc, bc = params["ctrl"][name]
        wc_all = wc_all.at[row:row + h, col:col + a].set(wc)
        bc_parts.append(bc)
        row += h
        col += a
    bc_all = jnp.concatenate(bc_parts, axis=1)                             # (1, 14)

    # Algebraic fusion of stages 2+3 (exact: no nonlinearity between them;
    # the module's relu(xc) is dead code).  Done in fp32, cast once to bf16.
    w23 = w_in_all @ wc_all                                                # (32, 14)
    b23 = b_in_all @ wc_all + bc_all                                       # (1, 14)

    w1_p = _pad2(w1, N_STATES, LANE).astype(jnp.bfloat16)                  # (24, 128)
    w23_p = _pad2(w23, LANE, LANE).astype(jnp.bfloat16)                    # (128, 128)
    b_stack = jnp.concatenate([_pad2(b1, 1, LANE),
                               _pad2(b23, 1, LANE)], axis=0)               # (2, 128)
    return w1_p, w23_p, b_stack


# ----------------------------- Pallas kernel --------------------------------

def _actor_kernel(x_ref, w1_ref, w23_ref, b_ref, out_ref):
    # Stage 1: lin1 + ReLU.  bf16 operands, fp32 accumulation.
    # Padded weight lanes are exact zeros -> padded h lanes are relu(0+0)=0.
    x = x_ref[...].astype(jnp.bfloat16)
    h = jnp.dot(x, w1_ref[...], preferred_element_type=jnp.float32)
    h = jnp.maximum(h + b_ref[0:1, :], 0.0)

    # Stage 2: fused (controller inputs @ block-diagonal shared heads) + tanh.
    o = jnp.dot(h.astype(jnp.bfloat16), w23_ref[...],
                preferred_element_type=jnp.float32)
    # Single unmasked lane-dense store of the whole (tile, 128) output slab.
    out_ref[...] = jnp.tanh(o + b_ref[1:2, :])


def _batch_tile(b):
    b8 = ((b + 7) // 8) * 8
    return min(MAX_B_TILE, b8)


@jax.jit
def shared_controller_actor(x, w1_p, w23_p, b_stack):
    """Full actor forward pass in one Pallas kernel (fused, lane-dense, bf16 MXU)."""
    b, n_states = x.shape
    tile = _batch_tile(b)
    b_pad = ((b + tile - 1) // tile) * tile

    # Pad only the ragged last batch tile (feature axis stays at n_states=24).
    if b_pad != b:
        x = jnp.concatenate(
            [x, jnp.zeros((b_pad - b, n_states), x.dtype)], axis=0)

    out_pad = pl.pallas_call(
        _actor_kernel,
        out_shape=jax.ShapeDtypeStruct((b_pad, LANE), jnp.float32),
        grid=(b_pad // tile,),
        in_specs=[
            pl.BlockSpec((tile, n_states), lambda i: (i, 0)),   # x tile (unpadded lanes)
            pl.BlockSpec((N_STATES, LANE), lambda i: (0, 0)),   # W1 (resident, bf16)
            pl.BlockSpec((LANE, LANE), lambda i: (0, 0)),       # W23 (resident, bf16)
            pl.BlockSpec((2, LANE), lambda i: (0, 0)),          # biases (resident, f32)
        ],
        out_specs=pl.BlockSpec((tile, LANE), lambda i: (i, 0)),
        compiler_params=pltpu.CompilerParams(
            dimension_semantics=("parallel",)),                 # megacore on v7x when grid >= 2
    )(x, w1_p, w23_p, b_stack)

    return out_pad[:b, :TOTAL_ACTIONS]


# ----------------------------- pure-JAX reference ----------------------------

def reference_forward(x, params):
    w1, b1 = params["lin1"]
    h = jnp.maximum(x @ w1 + b1, 0.0)
    outs = []
    for (win, bin_), name in zip(params["inputs"], CONTROLLER_LIST):
        xc = h @ win + bin_
        wc, bc = params["ctrl"][name]
        outs.append(xc @ wc + bc)
    return jnp.tanh(jnp.concatenate(outs, axis=1))


# ----------------------------- main ------------------------------------------

if __name__ == "__main__":
    key = jax.random.PRNGKey(0)
    kx, kp = jax.random.split(key)
    x = jax.random.normal(kx, (BATCH, N_STATES), jnp.float32)
    params = make_params(kp)

    # One-time host-side fusion/packing of weights (not per call).
    w1_p, w23_p, b_stack = prepare_packed_params(params)

    out = shared_controller_actor(x, w1_p, w23_p, b_stack)
    out = jax.block_until_ready(out)

    ref = reference_forward(x, params)
    assert out.shape == (BATCH, TOTAL_ACTIONS), out.shape
    # bf16 weights / in-kernel bf16 casts -> loosened tolerance (per review).
    assert jnp.allclose(out, ref, atol=4e-2, rtol=4e-2), \
        float(jnp.max(jnp.abs(out - ref)))

    print("KERNEL_OK")
</pallas_src>

<mosaic_0001>
module attributes {stable_mosaic.version = 11 : i64} {
  func.func @_actor_kernel(%arg0: i32, %arg1: memref<8x24xf32, #tpu.memory_space<vmem>>, %arg2: memref<24x128xbf16, #tpu.memory_space<vmem>>, %arg3: memref<128x128xbf16, #tpu.memory_space<vmem>>, %arg4: memref<2x128xf32, #tpu.memory_space<vmem>>, %arg5: memref<8x128xf32, #tpu.memory_space<vmem>>) attributes {dimension_semantics = [#tpu.dimension_semantics<parallel>], iteration_bounds = array<i64: 1>, scalar_prefetch = 0 : i64, scratch_operands = 0 : i64, tpu.core_type = #tpu.core_type<tc>, window_params = [{transform_indices = @transform_0, window_bounds = array<i64: 8, 24>}, {pipeline_mode = #tpu.pipeline_mode<synchronous>, transform_indices = @transform_1, window_bounds = array<i64: 24, 128>}, {pipeline_mode = #tpu.pipeline_mode<synchronous>, transform_indices = @transform_2, window_bounds = array<i64: 128, 128>}, {pipeline_mode = #tpu.pipeline_mode<synchronous>, transform_indices = @transform_3, window_bounds = array<i64: 2, 128>}, {transform_indices = @transform_4, window_bounds = array<i64: 8, 128>}]} {
    %c0 = arith.constant 0 : index
    %c0_0 = arith.constant 0 : index
    %0 = vector.load %arg1[%c0, %c0_0] : memref<8x24xf32, #tpu.memory_space<vmem>>, vector<8x24xf32>
    %1 = arith.truncf %0 : vector<8x24xf32> to vector<8x24xbf16>
    %c0_1 = arith.constant 0 : index
    %c0_2 = arith.constant 0 : index
    %2 = vector.load %arg2[%c0_1, %c0_2] : memref<24x128xbf16, #tpu.memory_space<vmem>>, vector<24x128xbf16>
    %cst = arith.constant dense<0.000000e+00> : vector<8x128xf32>
    %3 = tpu.matmul %1, %2, %cst {dimension_numbers = #tpu.dot_dimension_numbers<[1], [0], [0], [1], [0, 0, 1, 1], [], []>} : vector<8x24xbf16>, vector<24x128xbf16>, vector<8x128xf32> -> vector<8x128xf32>
    %c0_3 = arith.constant 0 : index
    %c0_4 = arith.constant 0 : index
    %4 = vector.load %arg4[%c0_3, %c0_4] : memref<2x128xf32, #tpu.memory_space<vmem>>, vector<1x128xf32>
    %5 = vector.broadcast %4 : vector<1x128xf32> to vector<8x128xf32>
    %6 = arith.addf %3, %5 : vector<8x128xf32>
    %cst_5 = arith.constant 0.000000e+00 : f32
    %7 = vector.broadcast %cst_5 : f32 to vector<8x128xf32>
    %8 = arith.maximumf %6, %7 : vector<8x128xf32>
    %9 = arith.truncf %8 : vector<8x128xf32> to vector<8x128xbf16>
    %c0_6 = arith.constant 0 : index
    %c0_7 = arith.constant 0 : index
    %10 = vector.load %arg3[%c0_6, %c0_7] : memref<128x128xbf16, #tpu.memory_space<vmem>>, vector<128x128xbf16>
    %cst_8 = arith.constant dense<0.000000e+00> : vector<8x128xf32>
    %11 = tpu.matmul %9, %10, %cst_8 {dimension_numbers = #tpu.dot_dimension_numbers<[1], [0], [0], [1], [0, 0, 1, 1], [], []>} : vector<8x128xbf16>, vector<128x128xbf16>, vector<8x128xf32> -> vector<8x128xf32>
    %c1 = arith.constant 1 : index
    %c0_9 = arith.constant 0 : index
    %12 = vector.load %arg4[%c1, %c0_9] : memref<2x128xf32, #tpu.memory_space<vmem>>, vector<1x128xf32>
    %13 = vector.broadcast %12 : vector<1x128xf32> to vector<8x128xf32>
    %14 = arith.addf %11, %13 : vector<8x128xf32>
    %15 = math.tanh %14 : vector<8x128xf32>
    %c0_10 = arith.constant 0 : index
    %c0_11 = arith.constant 0 : index
    %16 = vector.load %arg5[%c0_10, %c0_11] : memref<8x128xf32, #tpu.memory_space<vmem>>, vector<8x128xf32>
    tpu.vector_store %arg5[%c0_10, %c0_11], %15 {strides = array<i32>} : memref<8x128xf32, #tpu.memory_space<vmem>>, vector<8x128xf32>,
    return
  }
  func.func @transform_0(%arg0: i32) -> (i32, i32) {
    %c0_i32 = arith.constant 0 : i32
    %c0_i32_0 = arith.constant 0 : i32
    return %arg0, %c0_i32 : i32, i32
  }
  func.func @transform_1(%arg0: i32) -> (i32, i32) {
    %c0_i32 = arith.constant 0 : i32
    %c0_i32_0 = arith.constant 0 : i32
    %c0_i32_1 = arith.constant 0 : i32
    return %c0_i32, %c0_i32_0 : i32, i32
  }
  func.func @transform_2(%arg0: i32) -> (i32, i32) {
    %c0_i32 = arith.constant 0 : i32
    %c0_i32_0 = arith.constant 0 : i32
    %c0_i32_1 = arith.constant 0 : i32
    return %c0_i32, %c0_i32_0 : i32, i32
  }
  func.func @transform_3(%arg0: i32) -> (i32, i32) {
    %c0_i32 = arith.constant 0 : i32
    %c0_i32_0 = arith.constant 0 : i32
    %c0_i32_1 = arith.constant 0 : i32
    return %c0_i32, %c0_i32_0 : i32, i32
  }
  func.func @transform_4(%arg0: i32) -> (i32, i32) {
    %c0_i32 = arith.constant 0 : i32
    %c0_i32_0 = arith.constant 0 : i32
    return %arg0, %c0_i32 : i32, i32
  }
}

</mosaic_0001>

<llo_original>
// kernel: shared_controller_actor.1
$region0: #{shared_controller_actor.1}
  #allocation0 [shape = 'u32[]', space=smem, size = 0x4, offset = 0x4, fixed_abs, tag = 'smem constant byte address 0x4 - core index']
  #allocation1 [shape = 'u32[144,128]{1,0:T(1,128)}', space=vmem, size = 0x12000, scoped, tag = 'internal scratch']
  %s0 = inlined_call_operand.vmem [shape: f32[8,24], index: 0, kind: input, shape index: {}]
  %s1 = inlined_call_operand.vmem [shape: bf16[24,128], index: 1, kind: input, shape index: {}]
  %s2 = inlined_call_operand.hbm [shape: bf16[128,128], index: 2, kind: input, shape index: {}]
  %s3 = inlined_call_operand.vmem [shape: f32[2,128], index: 3, kind: input, shape index: {}]
  %s4 = inlined_call_operand.vmem [shape: f32[8,128], index: 4, kind: output, shape index: {}]
  %s5 = sld [smem:[#allocation0]]
  $region30: #{shared_controller_actor.1} parent=0
    _
  %s7 = ssub.s32 1, %s5
  %s8 = scalar_select 0, %s7, %s5
  $region1: #{shared_controller_actor.1} parent=0
    #allocation2 [shape = 'u8[32768]{0}', space=vmem, size = 0x8000, scoped, tag = 'input window, operand 2, single buffered']
    #allocation3 [shape = 's32[1]{0}', space=sflag, size = 0x4, scoped, tag = 'scoped memory for shared_controller_actor.1']
    %9 = vsyncpa [#allocation3], 0
    // Predicated region
    $region2: #{shared_controller_actor.1} parent=1 // pred_check
      _
    $region3: #{shared_controller_actor.1} parent=1 // pred_check_branch
      %11 = sbr.rel (0) target = $region5
    $region4: #{shared_controller_actor.1} parent=1 // pred_region
      _
    $region5: #{shared_controller_actor.1} parent=1 // pred_fallthru
      _
    // Predicated region
    $region6: #{shared_controller_actor.1} parent=1 // pred_check
      _
    $region7: #{shared_controller_actor.1} parent=1 // pred_check_branch
      %13 = sbr.rel (0) target = $region9
    $region8: #{shared_controller_actor.1} parent=1 // pred_region
      _
    $region9: #{shared_controller_actor.1} parent=1 // pred_fallthru
      _
    // Predicated region
    $region10: #{shared_controller_actor.1} parent=1 // pred_check
      _
    $region11: #{shared_controller_actor.1} parent=1 // pred_check_branch
      %15 = sbr.rel (0) target = $region13
    $region12: #{shared_controller_actor.1} parent=1 // pred_region
      %s17 = ssub.s32 1024, 1024
      %18 = vsyncadd [#allocation3], %s17
      %s19 = sshll.u32 [#allocation2], 4
      %s20 = int_to_ptr.vmem [resolvable:$true] %s19
      %25 = dma.hbm_to_vmem [thread:$0]  %s2, 1024, %s20, [#allocation3], 64, 64, 4
    $region13: #{shared_controller_actor.1} parent=1 // pred_fallthru
      _
    // Predicated region
    $region14: #{shared_controller_actor.1} parent=1 // pred_check
      _
    $region15: #{shared_controller_actor.1} parent=1 // pred_check_branch
      %27 = sbr.rel (0) target = $region17
    $region16: #{shared_controller_actor.1} parent=1 // pred_region
      _
    $region17: #{shared_controller_actor.1} parent=1 // pred_fallthru
      _
    // Predicated region
    $region18: #{shared_controller_actor.1} parent=1 // pred_check
      _
    $region19: #{shared_controller_actor.1} parent=1 // pred_check_branch
      %29 = sbr.rel (0) target = $region21
    $region20: #{shared_controller_actor.1} parent=1 // pred_region
      %30 = dma.done [#allocation3], 1024
    $region21: #{shared_controller_actor.1} parent=1 // pred_fallthru
      _
    %v32 = vld [vmem:[%s0] sm:$0xff]
    %v33 = vpack.c.bf16 %v32, %v32
    %v34 = vld [vmem:[%s1] sm:$0xf]
    %v35 = vld [vmem:[%s1 + $0x4] sm:$0xf]
    %v36 = vld [vmem:[%s1 + $0x8] sm:$0xf]
    %v37 = vld [vmem:[%s3] sm:$0x1]
    %v38 = vlaneseq
    %v39 = vshrl.u32 %v38, 7
    %v40 = vsub.s32 0, %v39
    %v41 = vrot.slane %v37, %v40
    %v45 = vunpack.c.l.b16 %v34
    %v46 = vunpack.c.l.b16 %v35
    %v47 = vunpack.c.l.b16 %v36
    %v48 = vpack.c.b16 %v46, %v45
    %v49 = vpack.c.b16 %v47, %v47
    %vm51 = vcmask 195584
    %v53 = vsel %vm51, %v33, 0
    %vm55 = vcmask 1043456
    %v57 = vsel %vm55, %v49, 0
    %59 = vmatprep.subr.bf16.mxu0 0
    %60 = vmatpush1.bf16.msra.mxu0 0
    %61 = vmatprep.subr.bf16.mxu0 0
    %62 = vmatpush1.bf16.msra.mxu0 0
    %63 = vmatprep.subr.bf16.mxu0 0
    %64 = vmatpush1.bf16.msra.mxu0 0
    %65 = vmatprep.subr.bf16.mxu0 0
    %66 = vmatpush1.bf16.msra.mxu0 0
    %67 = vmatprep.subr.bf16.mxu0 0
    %68 = vmatpush1.bf16.msra.mxu0 0
    %69 = vmatprep.subr.bf16.mxu0 0
    %70 = vmatpush1.bf16.msra.mxu0 0
    %71 = vmatprep.subr.bf16.mxu0 0
    %72 = vmatpush1.bf16.msra.mxu0 %v57
    %73 = vmatprep.subr.bf16.mxu0 0
    %74 = vmatpush1.bf16.msra.mxu0 %v48
    %75 = vmatprep.subr.bf16.mxu0 0
    %76 = vmatpush2.bf16.msra.mxu0 0
    %77 = vmatprep.subr.bf16.mxu0 0
    %78 = vmatpush2.bf16.msra.mxu0 0
    %79 = vmatprep.subr.bf16.mxu0 0
    %80 = vmatpush2.bf16.msra.mxu0 0
    %81 = vmatprep.subr.bf16.mxu0 0
    %82 = vmatpush2.bf16.msra.mxu0 0
    %83 = vmatprep.subr.bf16.mxu0 0
    %84 = vmatpush2.bf16.msra.mxu0 0
    %85 = vmatprep.subr.bf16.mxu0 0
    %86 = vmatpush2.bf16.msra.mxu0 0
    %87 = vmatprep.subr.bf16.mxu0 0
    %88 = vmatpush2.bf16.msra.mxu0 0
    %89 = vmatprep.subr.bf16.mxu0 0
    %90 = vmatpush2.bf16.msra.mxu0 0
    %91 = vmatprep.mubr.bf16.mxu0 0
    %92 = vmatmul.mubr.bf16.gmra.mxu0 %v53
    %v93 = vpop.f32.mrf.mxu0
    %v94 = vadd.f32 %v41, %v93
    %v95 = vpop.f32.mrf.mxu0
    %v96 = vpop.f32.mrf.mxu0
    %v97 = vpop.f32.mrf.mxu0
    %98 = vdwg.mxu0
    %v99 = vmax.f32 %v94, 0.0
    %v100 = vpack.c.bf16 %v99, %v99
    %v101 = vld [vmem:[#allocation2] sm:$0xf]
    %v102 = vld [vmem:[#allocation2 + $0x4] sm:$0xf]
    %v103 = vld [vmem:[#allocation2 + $0x8] sm:$0xf]
    %v104 = vld [vmem:[#allocation2 + $0xc] sm:$0xf]
    %v105 = vld [vmem:[#allocation2 + $0x10] sm:$0xf]
    %v106 = vld [vmem:[#allocation2 + $0x14] sm:$0xf]
    %v107 = vld [vmem:[#allocation2 + $0x18] sm:$0xf]
    %v108 = vld [vmem:[#allocation2 + $0x1c] sm:$0xf]
    %v109 = vld [vmem:[#allocation2 + $0x20] sm:$0xf]
    %v110 = vld [vmem:[#allocation2 + $0x24] sm:$0xf]
    %v111 = vld [vmem:[#allocation2 + $0x28] sm:$0xf]
    %v112 = vld [vmem:[#allocation2 + $0x2c] sm:$0xf]
    %v113 = vld [vmem:[#allocation2 + $0x30] sm:$0xf]
    %v114 = vld [vmem:[#allocation2 + $0x34] sm:$0xf]
    %v115 = vld [vmem:[#allocation2 + $0x38] sm:$0xf]
    %v116 = vld [vmem:[#allocation2 + $0x3c] sm:$0xf]
    %v117 = vld [vmem:[%s3 + $0x1] sm:$0x1]
    %v118 = vlaneseq
    %v119 = vshrl.u32 %v118, 7
    %v120 = vsub.s32 0, %v119
    %v121 = vrot.slane %v117, %v120
    %v138 = vunpack.c.l.b16 %v101
    %v139 = vunpack.c.l.b16 %v102
    %v140 = vunpack.c.l.b16 %v103
    %v141 = vunpack.c.l.b16 %v104
    %v142 = vunpack.c.l.b16 %v105
    %v143 = vunpack.c.l.b16 %v106
    %v144 = vunpack.c.l.b16 %v107
    %v145 = vunpack.c.l.b16 %v108
    %v146 = vunpack.c.l.b16 %v109
    %v147 = vunpack.c.l.b16 %v110
    %v148 = vunpack.c.l.b16 %v111
    %v149 = vunpack.c.l.b16 %v112
    %v150 = vunpack.c.l.b16 %v113
    %v151 = vunpack.c.l.b16 %v114
    %v152 = vunpack.c.l.b16 %v115
    %v153 = vunpack.c.l.b16 %v116
    %v154 = vpack.c.b16 %v139, %v138
    %v155 = vpack.c.b16 %v141, %v140
    %v156 = vpack.c.b16 %v143, %v142
    %v157 = vpack.c.b16 %v145, %v144
    %v158 = vpack.c.b16 %v147, %v146
    %v159 = vpack.c.b16 %v149, %v148
    %v160 = vpack.c.b16 %v151, %v150
    %v161 = vpack.c.b16 %v153, %v152
    %170 = vmatprep.subr.bf16.mxu0 0
    %171 = vmatpush1.bf16.msra.mxu0 %v161
    %172 = vmatprep.subr.bf16.mxu0 0
    %173 = vmatpush1.bf16.msra.mxu0 %v160
    %174 = vmatprep.subr.bf16.mxu0 0
    %175 = vmatpush1.bf16.msra.mxu0 %v159
    %176 = vmatprep.subr.bf16.mxu0 0
    %177 = vmatpush1.bf16.msra.mxu0 %v158
    %178 = vmatprep.subr.bf16.mxu0 0
    %179 = vmatpush1.bf16.msra.mxu0 %v157
    %180 = vmatprep.subr.bf16.mxu0 0
    %181 = vmatpush1.bf16.msra.mxu0 %v156
    %182 = vmatprep.subr.bf16.mxu0 0
    %183 = vmatpush1.bf16.msra.mxu0 %v155
    %184 = vmatprep.subr.bf16.mxu0 0
    %185 = vmatpush1.bf16.msra.mxu0 %v154
    %186 = vmatprep.subr.bf16.mxu0 0
    %187 = vmatpush2.bf16.msra.mxu0 0
    %188 = vmatprep.subr.bf16.mxu0 0
    %189 = vmatpush2.bf16.msra.mxu0 0
    %190 = vmatprep.subr.bf16.mxu0 0
    %191 = vmatpush2.bf16.msra.mxu0 0
    %192 = vmatprep.subr.bf16.mxu0 0
    %193 = vmatpush2.bf16.msra.mxu0 0
    %194 = vmatprep.subr.bf16.mxu0 0
    %195 = vmatpush2.bf16.msra.mxu0 0
    %196 = vmatprep.subr.bf16.mxu0 0
    %197 = vmatpush2.bf16.msra.mxu0 0
    %198 = vmatprep.subr.bf16.mxu0 0
    %199 = vmatpush2.bf16.msra.mxu0 0
    %200 = vmatprep.subr.bf16.mxu0 0
    %201 = vmatpush2.bf16.msra.mxu0 0
    %202 = vmatprep.mubr.bf16.mxu0 0
    %203 = vmatmul.mubr.bf16.gmra.mxu0 %v100
    %v204 = vpop.f32.mrf.mxu0
    %v205 = vadd.f32 %v121, %v204
    %v206 = vpop.f32.mrf.mxu0
    %v207 = vpop.f32.mrf.mxu0
    %v208 = vpop.f32.mrf.mxu0
    %209 = vdwg.mxu0
    %v210 = vtanh.pop %v205
    %211 = vst [vmem:[%s4] sm:$0xff] %v210
    // Predicated region
    $region22: #{shared_controller_actor.1} parent=1 // pred_check
      _
    $region23: #{shared_controller_actor.1} parent=1 // pred_check_branch
      %213 = sbr.rel (0) target = $region25
    $region24: #{shared_controller_actor.1} parent=1 // pred_region
      _
    $region25: #{shared_controller_actor.1} parent=1 // pred_fallthru
      _
    // Predicated region
    $region26: #{shared_controller_actor.1} parent=1 // pred_check
      _
    $region27: #{shared_controller_actor.1} parent=1 // pred_check_branch
      %215 = sbr.rel (0) target = $region29
    $region28: #{shared_controller_actor.1} parent=1 // pred_region
      _
    $region29: #{shared_controller_actor.1} parent=1 // pred_fallthru
      _
    %216 = vsyncpa [#allocation3], 1

</llo_original>
